<compile_context>
chip_gen: v7x
topology: tpu7x:2x2x1
jax: 0.10.0
libtpu: 0.0.40
codegen_flags: <defaults>
</compile_context>

<pallas_src>
import functools

import jax
import jax.numpy as jnp
from jax import lax
from jax.experimental import pallas as pl
from jax.experimental.pallas import tpu as pltpu


_MIN_PALLAS_K = 128                 # below this, a plain XLA dot beats any kernel
_VMEM_BUDGET = 40 * 1024 * 1024     # per-step tile budget; safe on v5e/v6e/v7x


def _round_up(x, m):
    return ((x + m - 1) // m) * m


def _sublane(dtype):
    return 16 if jnp.dtype(dtype).itemsize == 2 else 8


# --------------------------------------------------------------------------- #
# Kernels
# --------------------------------------------------------------------------- #
def _proj2d_kernel(x_ref, pt_ref, o_ref):
    # out = X @ P^T ; P^T is pre-computed in the wrapper -> no in-kernel transpose.
    o_ref[...] = jnp.dot(
        x_ref[...], pt_ref[...], preferred_element_type=jnp.float32
    ).astype(o_ref.dtype)


def _proj3d_kernel(p_ref, x_ref, o_ref, t_ref, *, tb, k, fuse_rhs):
    # out[b] = P @ X[b] @ P for `tb` batch slabs per grid step.
    p = p_ref[...]

    def left(b, carry):
        # Cast the intermediate back to the input dtype so the second matmul is a
        # native-rate MXU matmul (avoids the slow mixed f32 x bf16 path).
        t_ref[b] = jnp.dot(
            p, x_ref[b], preferred_element_type=jnp.float32
        ).astype(t_ref.dtype)
        return carry

    lax.fori_loop(0, tb, left, 0, unroll=True)

    if fuse_rhs:
        # Fuse the right multiply of all tb slabs into ONE (tb*k, k) @ (k, k)
        # matmul: fills the MXU M dimension and amortizes per-step overhead.
        t = t_ref[...].reshape(tb * k, k)
        o_ref[...] = (
            jnp.dot(t, p, preferred_element_type=jnp.float32)
            .astype(o_ref.dtype)
            .reshape(tb, k, k)
        )
    else:
        # K not sublane-aligned: the big merge-reshape would force relayout
        # copies, so do the right multiply per slab instead.
        def right(b, carry):
            o_ref[b] = jnp.dot(
                t_ref[b], p, preferred_element_type=jnp.float32
            ).astype(o_ref.dtype)
            return carry

        lax.fori_loop(0, tb, right, 0, unroll=True)


# --------------------------------------------------------------------------- #
# Wrappers
# --------------------------------------------------------------------------- #
def _forward_2d(X, P):
    B, K = X.shape
    itemsize = jnp.dtype(X.dtype).itemsize
    sub = _sublane(X.dtype)

    row_bytes = K * itemsize
    p_bytes = K * K * itemsize

    # Batch tile: as large as the VMEM budget allows (this path is HBM / step-
    # overhead bound, so bigger tiles amortize the ~0.35us per-step cost), capped
    # at 1024 and kept <= ceil(B/2) so megacore (v7x) gets >= 2 grid steps.
    budget_rows = (_VMEM_BUDGET - 4 * p_bytes) // (4 * row_bytes)   # 2x-buffered in+out
    budget_rows = max(sub, (budget_rows // sub) * sub)
    tb = min(1024, _round_up(B, sub), budget_rows)
    if B > 2 * sub and tb >= B:
        tb = _round_up(pl.cdiv(B, 2), sub)
    tb = int(max(tb, sub))

    grid = (int(pl.cdiv(B, tb)),)
    vmem_need = 4 * tb * row_bytes + 4 * p_bytes
    vmem_limit = int(min(max(2 * vmem_need, 32 * 1024 * 1024), 48 * 1024 * 1024))

    # P is symmetric by construction, but transpose host-side anyway (tiny,
    # constant) so the kernel is exactly the spec's X @ P^T with no in-kernel
    # transpose.
    Pt = P.T.astype(X.dtype)

    # No padding / slicing of X: the feature dim uses a full-extent block and
    # out-of-range rows of a partial trailing batch block are discarded on write
    # (safe: each output row depends only on its own input row).
    return pl.pallas_call(
        _proj2d_kernel,
        out_shape=jax.ShapeDtypeStruct((B, K), X.dtype),
        grid=grid,
        in_specs=[
            pl.BlockSpec((tb, K), lambda i: (i, 0)),   # X tile
            # P^T is grid-invariant (constant index_map) so it is DMA'd once.
            # TODO(synk): for very large K, tile P^T (extra N/K grid axes with an
            # f32 accumulator) and/or single-buffer it instead of keeping the full
            # K x K matrix resident (v7x has only 64 MiB VMEM).
            pl.BlockSpec((K, K), lambda i: (0, 0)),
        ],
        out_specs=pl.BlockSpec((tb, K), lambda i: (i, 0)),
        compiler_params=pltpu.CompilerParams(
            dimension_semantics=("parallel",),
            vmem_limit_bytes=vmem_limit,
        ),
    )(X, Pt)


def _forward_3d(X, P):
    B, K, _ = X.shape
    itemsize = jnp.dtype(X.dtype).itemsize
    sub = _sublane(X.dtype)

    slab_bytes = K * K * itemsize
    per_slab = 5 * slab_bytes          # 2x in + 2x out (double-buffered) + t scratch
    tb = max(1, min(8, _VMEM_BUDGET // max(per_slab, 1)))
    if B >= 2:
        tb = min(tb, pl.cdiv(B, 2))    # keep grid >= 2 for megacore when possible
    tb = int(tb)

    grid = (int(pl.cdiv(B, tb)),)
    vmem_need = tb * per_slab + 2 * slab_bytes
    vmem_limit = int(min(max(2 * vmem_need, 32 * 1024 * 1024), 48 * 1024 * 1024))

    fuse_rhs = (K % sub) == 0          # clean sublane merge for the (tb*K, K) reshape
    kernel = functools.partial(_proj3d_kernel, tb=tb, k=K, fuse_rhs=fuse_rhs)

    Pp = P.astype(X.dtype)

    # No padding of X: the last two block dims equal the full array dims; partial
    # trailing batch blocks have their out-of-range slabs discarded on write.
    return pl.pallas_call(
        kernel,
        out_shape=jax.ShapeDtypeStruct((B, K, K), X.dtype),
        grid=grid,
        in_specs=[
            pl.BlockSpec((K, K), lambda b: (0, 0)),        # P, grid-invariant
            pl.BlockSpec((tb, K, K), lambda b: (b, 0, 0)),  # tb batch slabs
        ],
        out_specs=pl.BlockSpec((tb, K, K), lambda b: (b, 0, 0)),
        scratch_shapes=[pltpu.VMEM((tb, K, K), X.dtype)],   # intermediates P @ X[b]
        compiler_params=pltpu.CompilerParams(
            dimension_semantics=("parallel",),
            vmem_limit_bytes=vmem_limit,
        ),
    )(Pp, X)


# --------------------------------------------------------------------------- #
# Module
# --------------------------------------------------------------------------- #
class Vect1OrthogonalProjectorHierarchical:
    """JAX/Pallas port of the PyTorch module (projector built host-side at init)."""

    def __init__(self, tree, layer, K_eff):
        self.tree = tree
        self.P = self.projector(layer, K_eff)

    def projector(self, layer, K_eff):
        # Faithful to the PyTorch original, including that `mapping_index` is NOT
        # advanced for single-child parents (the original's `continue` skips the
        # increment too).  The original writes the block transposed
        # (P[span, span.unsqueeze(1)] = Q), which is identical since Q is symmetric.
        P = jnp.eye(K_eff, dtype=jnp.float32)
        mapping_index = 0
        for parent in self.tree.getNodesAtDepth(layer - 1):
            d = len(parent.children)
            if d == 1:
                continue
            Q = jnp.eye(d, dtype=jnp.float32) - jnp.ones((d, d), jnp.float32) / d
            P = P.at[mapping_index:mapping_index + d,
                     mapping_index:mapping_index + d].set(Q)
            mapping_index += d
        return P

    def __call__(self, X):
        P = self.P.astype(X.dtype)
        K = self.P.shape[0]
        if X.ndim == 2:
            if K < _MIN_PALLAS_K:
                # Small-K fast path: pad/pipeline overhead can never pay off here.
                return jnp.einsum("ij,bj->bi", P, X)
            return _forward_2d(X, P)
        elif X.ndim == 3:
            if K < _MIN_PALLAS_K:
                return jnp.einsum("ij,bjk,kl->bil", P, X, P)
            return _forward_3d(X, P)
        return None  # other ranks return None in the original module too


# --------------------------------------------------------------------------- #
# Minimal tree stand-in (host-side only; used to build P exactly like the spec)
# --------------------------------------------------------------------------- #
class _Node:
    def __init__(self, children=()):
        self.children = list(children)


class _Tree:
    """levels[d] = nodes at depth d; root at 0, parents at 1, leaves at 2."""

    def __init__(self, children_counts):
        parents = [_Node([_Node() for _ in range(d)]) for d in children_counts]
        root = _Node(parents)
        leaves = [c for p in parents for c in p.children]
        self._levels = [[root], parents, leaves]

    def getNodesAtDepth(self, depth):
        return self._levels[depth]


# --------------------------------------------------------------------------- #
# Demo / correctness check
# --------------------------------------------------------------------------- #
if __name__ == "__main__":
    # K_eff large enough to exercise the Pallas path (>= _MIN_PALLAS_K), and one
    # single-child parent to exercise the `d == 1` branch of projector().
    children_counts = [5] * 30 + [1] + [9]        # sums to 160
    K_eff = sum(children_counts)                  # 160
    layer = 2
    tree = _Tree(children_counts)
    proj = Vect1OrthogonalProjectorHierarchical(tree, layer, K_eff)

    key = jax.random.PRNGKey(0)
    k2, k3 = jax.random.split(key)
    B2, B3 = 20, 5                                # exercise grid>=2 and partial blocks
    X2 = jax.random.normal(k2, (B2, K_eff), jnp.float32)           # (B, K)    path
    X3 = jax.random.normal(k3, (B3, K_eff, K_eff), jnp.float32)    # (B, K, K) path

    out2 = jax.block_until_ready(proj(X2))
    out3 = jax.block_until_ready(proj(X3))

    P = proj.P
    hi = jax.lax.Precision.HIGHEST
    ref2 = jnp.einsum("ij,bj->bi", P, X2, precision=hi)             # (P @ x) per row
    ref3 = jnp.einsum("ij,bjk,kl->bil", P, X3, P, precision=hi)     # P @ X @ P per slab

    assert out2.shape == X2.shape and out2.dtype == X2.dtype
    assert out3.shape == X3.shape and out3.dtype == X3.dtype
    assert jnp.allclose(out2, ref2, atol=1e-3, rtol=1e-3)
    assert jnp.allclose(out3, ref3, atol=1e-3, rtol=1e-3)

    # Small-K fast path (skips Pallas, as recommended for K_eff below ~128).
    small = Vect1OrthogonalProjectorHierarchical(_Tree([3, 1, 4, 2]), layer, 10)
    Xs = jax.random.normal(key, (4, 10), jnp.float32)
    ref_s = jnp.einsum("ij,bj->bi", small.P, Xs)
    assert jnp.allclose(small(Xs), ref_s, atol=1e-5, rtol=1e-5)

    print("KERNEL_OK")
</pallas_src>

<mosaic_0001>
module attributes {stable_mosaic.version = 11 : i64} {
  func.func @_proj2d_kernel(%arg0: i32, %arg1: memref<16x160xf32, #tpu.memory_space<vmem>>, %arg2: memref<160x160xf32, #tpu.memory_space<vmem>>, %arg3: memref<16x160xf32, #tpu.memory_space<vmem>>) attributes {dimension_semantics = [#tpu.dimension_semantics<parallel>], iteration_bounds = array<i64: 2>, scalar_prefetch = 0 : i64, scratch_operands = 0 : i64, tpu.core_type = #tpu.core_type<tc>, window_params = [{transform_indices = @transform_0, window_bounds = array<i64: 16, 160>}, {pipeline_mode = #tpu.pipeline_mode<synchronous>, transform_indices = @transform_1, window_bounds = array<i64: 160, 160>}, {transform_indices = @transform_2, window_bounds = array<i64: 16, 160>}]} {
    %c0 = arith.constant 0 : index
    %c0_0 = arith.constant 0 : index
    %0 = vector.load %arg1[%c0, %c0_0] : memref<16x160xf32, #tpu.memory_space<vmem>>, vector<16x160xf32>
    %c0_1 = arith.constant 0 : index
    %c0_2 = arith.constant 0 : index
    %1 = vector.load %arg2[%c0_1, %c0_2] : memref<160x160xf32, #tpu.memory_space<vmem>>, vector<160x160xf32>
    %cst = arith.constant dense<0.000000e+00> : vector<16x160xf32>
    %2 = tpu.matmul %0, %1, %cst {dimension_numbers = #tpu.dot_dimension_numbers<[1], [0], [0], [1], [0, 0, 1, 1], [], []>} : vector<16x160xf32>, vector<160x160xf32>, vector<16x160xf32> -> vector<16x160xf32>
    %c0_3 = arith.constant 0 : index
    %c0_4 = arith.constant 0 : index
    %3 = vector.load %arg3[%c0_3, %c0_4] : memref<16x160xf32, #tpu.memory_space<vmem>>, vector<16x160xf32>
    tpu.vector_store %arg3[%c0_3, %c0_4], %2 {strides = array<i32>} : memref<16x160xf32, #tpu.memory_space<vmem>>, vector<16x160xf32>,
    return
  }
  func.func @transform_0(%arg0: i32) -> (i32, i32) {
    %c0_i32 = arith.constant 0 : i32
    %c0_i32_0 = arith.constant 0 : i32
    return %arg0, %c0_i32 : i32, i32
  }
  func.func @transform_1(%arg0: i32) -> (i32, i32) {
    %c0_i32 = arith.constant 0 : i32
    %c0_i32_0 = arith.constant 0 : i32
    %c0_i32_1 = arith.constant 0 : i32
    return %c0_i32, %c0_i32_0 : i32, i32
  }
  func.func @transform_2(%arg0: i32) -> (i32, i32) {
    %c0_i32 = arith.constant 0 : i32
    %c0_i32_0 = arith.constant 0 : i32
    return %arg0, %c0_i32 : i32, i32
  }
}

</mosaic_0001>

<llo_original>
// kernel: tpu_custom_call.1
$region0: #{tpu_custom_call.1}
  #allocation0 [shape = 'u32[]', space=smem, size = 0x4, offset = 0x4, fixed_abs, tag = 'smem constant byte address 0x4 - core index']
  #allocation1 [shape = 'u32[144,128]{1,0:T(1,128)}', space=vmem, size = 0x12000, scoped, tag = 'internal scratch']
  %s0 = inlined_call_operand.hbm [shape: f32[20,160], index: 0, kind: input, shape index: {}]
  %s1 = inlined_call_operand.hbm [shape: f32[160,160], index: 1, kind: input, shape index: {}]
  %s2 = inlined_call_operand.hbm [shape: f32[20,160], index: 2, kind: output, shape index: {}]
  %s3 = sld [smem:[#allocation0]]
  $region49: #{tpu_custom_call.1} parent=0
    _
  %s5 = ssub.s32 1, %s3
  %s6 = scalar_select 0, %s5, %s3
  $region1: #{tpu_custom_call.1} parent=0
    #allocation2 [shape = 'u8[32768]{0}', space=vmem, size = 0x8000, scoped, tag = 'input window, operand 0']
    #allocation3 [shape = 's32[2]{0}', space=sflag, size = 0x8, scoped, tag = 'scoped memory for tpu_custom_call.1']
    #allocation4 [shape = 's32[2]{0}', space=sflag, size = 0x8, scoped, tag = 'scoped memory for tpu_custom_call.1']
    #allocation5 [shape = 'u8[163840]{0}', space=vmem, size = 0x28000, scoped, tag = 'input window, operand 1, single buffered']
    #allocation6 [shape = 's32[1]{0}', space=sflag, size = 0x4, scoped, tag = 'scoped memory for tpu_custom_call.1']
    #allocation7 [shape = 'u8[32768]{0}', space=vmem, size = 0x8000, scoped, tag = 'output window, operand 0']
    %7 = vsyncpa [#allocation3], 0
    %s8 = scalar_lea.sflag [#allocation3], 1
    %9 = vsyncpa %s8, 0
    %10 = vsyncpa [#allocation6], 0
    %11 = vsyncpa [#allocation4], 0
    %s12 = scalar_lea.sflag [#allocation4], 1
    %13 = vsyncpa %s12, 0
    loop: start=0, step=1, limit=4
    $region2: #{tpu_custom_call.1} parent=1 // loop_pre_header
      _
    $region3: #{tpu_custom_call.1} parent=1 // loop_header
      %s15 = sphi 0, %s19
      %p16 = scmp.ge.s32.totalorder %s15, 4
      %s25 = sphi 0, %s27
      %s28 = sphi 0, %s25
      %s29 = sphi 0, %s28
      %s45 = sphi 0, %s29
      %s49 = sphi 0, %s49
      %s51 = sphi 0, %s49
      %s52 = sphi 0, %s51
      %s66 = sphi 0, %s52
      %s72 = sphi 0, %s74
      %s75 = sphi 0, %s72
      %s76 = sphi 0, %s75
      %s92 = sphi 0, %s76
    $region4: #{tpu_custom_call.1} parent=1 // loop_header_branch
      %18 = sbr.rel (%p16) target = $region8
    $region5: #{tpu_custom_call.1} parent=1 // loop_body
      %s20 = ssub.s32 %s15, 1
      %s21 = ssub.s32 %s15, 2
      %s22 = sadd.s32 %s15, 1
      %s23 = ssub.s32 %s15, %s22
      %p24 = scmp.eq.s32.totalorder %s23, 0
      %s26 = sadd.s32 %s25, 1
      %s27 = scalar_select %p24, %s25, %s26
      %p30 = pneg %p24
      %p31 = scmp.eq.s32.totalorder %s15, 1
      %p32 = por %p30, %p31
      %p33 = scmp.ne.s32.totalorder %s25, %s28
      %p34 = scmp.eq.s32.totalorder %s15, 0
      %p35 = por %p33, %p34
      %p36 = scmp.ne.s32.totalorder %s25, %s28
      %p37 = scmp.eq.s32.totalorder %s20, 1
      %p38 = por %p36, %p37
      %p39 = scmp.ne.s32.totalorder %s28, %s29
      %p40 = scmp.eq.s32.totalorder %s20, 0
      %p41 = por %p39, %p40
      %p42 = scmp.ne.s32.totalorder %s28, %s29
      %p43 = scmp.eq.s32.totalorder %s21, 1
      %p44 = por %p42, %p43
      %p46 = scmp.ne.s32.totalorder %s29, %s45
      %p47 = scmp.eq.s32.totalorder %s21, 0
      %p48 = por %p46, %p47
      %s50 = sadd.s32 %s49, 1
      %p53 = scmp.eq.s32.totalorder %s15, 1
      %p54 = scmp.ne.s32.totalorder %s49, %s51
      %p55 = scmp.eq.s32.totalorder %s15, 0
      %p56 = por %p54, %p55
      %p57 = scmp.ne.s32.totalorder %s49, %s51
      %p58 = scmp.eq.s32.totalorder %s20, 1
      %p59 = por %p57, %p58
      %p60 = scmp.ne.s32.totalorder %s51, %s52
      %p61 = scmp.eq.s32.totalorder %s20, 0
      %p62 = por %p60, %p61
      %p63 = scmp.ne.s32.totalorder %s51, %s52
      %p64 = scmp.eq.s32.totalorder %s21, 1
      %p65 = por %p63, %p64
      %p67 = scmp.ne.s32.totalorder %s52, %s66
      %p68 = scmp.eq.s32.totalorder %s21, 0
      %p69 = por %p67, %p68
      %s70 = ssub.s32 %s15, %s22
      %p71 = scmp.eq.s32.totalorder %s70, 0
      %s73 = sadd.s32 %s72, 1
      %s74 = scalar_select %p71, %s72, %s73
      %p77 = pneg %p71
      %p78 = scmp.eq.s32.totalorder %s15, 1
      %p79 = por %p77, %p78
      %p80 = scmp.ne.s32.totalorder %s72, %s75
      %p81 = scmp.eq.s32.totalorder %s15, 0
      %p82 = por %p80, %p81
      %p83 = scmp.ne.s32.totalorder %s72, %s75
      %p84 = scmp.eq.s32.totalorder %s20, 1
      %p85 = por %p83, %p84
      %p86 = scmp.ne.s32.totalorder %s75, %s76
      %p87 = scmp.eq.s32.totalorder %s20, 0
      %p88 = por %p86, %p87
      %p89 = scmp.ne.s32.totalorder %s75, %s76
      %p90 = scmp.eq.s32.totalorder %s21, 1
      %p91 = por %p89, %p90
      %p93 = scmp.ne.s32.totalorder %s76, %s92
      %p94 = scmp.eq.s32.totalorder %s21, 0
      %p95 = por %p93, %p94
      %p96 = scmp.le.s32.totalorder 1, %s15
      %p97 = scmp.lt.s32.totalorder %s15, 3
      %p98 = pnand %p96, %p97
      %p99 = pneg %p98
      // Predicated region
      $region9: #{tpu_custom_call.1} parent=5 // pred_check
        _
      $region10: #{tpu_custom_call.1} parent=5 // pred_check_branch
        %101 = sbr.rel (%p98) target = $region12
      $region11: #{tpu_custom_call.1} parent=5 // pred_region
        %s102 = ssub.s32 %s15, 1
        // Predicated region
        $region13: #{tpu_custom_call.1} parent=11 // pred_check
          %p103 = pneg %p62
        $region14: #{tpu_custom_call.1} parent=11 // pred_check_branch
          %105 = sbr.rel (%p103) target = $region16
        $region15: #{tpu_custom_call.1} parent=11 // pred_region
          %s107 = ssub.s32 5120, 5120
          %108 = vsyncadd [#allocation6], %s107
          %s109 = sshll.u32 [#allocation5], 4
          %s110 = int_to_ptr.vmem [resolvable:$true] %s109
          %115 = dma.hbm_to_vmem [thread:$0]  %s1, 5120, %s110, [#allocation6], 256, 256, 16
        $region16: #{tpu_custom_call.1} parent=11 // pred_fallthru
          _
      $region12: #{tpu_custom_call.1} parent=5 // pred_fallthru
        _
      %p116 = scmp.lt.s32.totalorder %s15, 2
      // Predicated region
      $region17: #{tpu_custom_call.1} parent=5 // pred_check
        %p117 = pneg %p116
      $region18: #{tpu_custom_call.1} parent=5 // pred_check_branch
        %119 = sbr.rel (%p117) target = $region20
      $region19: #{tpu_custom_call.1} parent=5 // pred_region
        // Predicated region
        $region21: #{tpu_custom_call.1} parent=19 // pred_check
          %p120 = pneg %p35
        $region22: #{tpu_custom_call.1} parent=19 // pred_check_branch
          %122 = sbr.rel (%p120) target = $region24
        $region23: #{tpu_custom_call.1} parent=19 // pred_region
          %s123 = sand.u32 %s25, 1
          %s124 = scalar_lea.sflag [#allocation3], %s123
          %s125 = sand.u32 %s25, 1
          %s126 = smul.addr %s125, 32
          %s127 = scalar_lea.vmem [#allocation2], %s126
          %s128 = smul.u32 2, %s15
          %s129 = ssub.s32 3, %s128
          %p130 = scmp.lt.s32.totalorder %s129, 2
          %s131 = scalar_select %p130, %s129, 2
          %s132 = smul.u32 128, %s131
          %s133 = smul.u32 %s132, 2
          %s135 = ssub.s32 512, %s133
          %136 = vsyncadd %s124, %s135
          %p137 = scmp.ne.s32.totalorder 0, %s133
          %s138 = smul.addr %s128, 2
          %s139 = smul.addr %s138, 128
          %s140 = scalar_lea.hbm %s0, %s139
          %s141 = smul.u32 16, %s131
          %s142 = sshll.u32 %s127, 4
          %s143 = int_to_ptr.vmem [resolvable:$true] %s142
          %s144 = sshll.u32 %s141, 4
          %148 = dma.hbm_to_vmem [thread:$0]  (%p137), %s140, %s144, %s143, %s124, 256, 256, 16
        $region24: #{tpu_custom_call.1} parent=19 // pred_fallthru
          _
      $region20: #{tpu_custom_call.1} parent=5 // pred_fallthru
        _
      %p149 = scmp.le.s32.totalorder 1, %s15
      %p150 = scmp.lt.s32.totalorder %s15, 3
      %p151 = pnand %p149, %p150
      %p152 = pneg %p151
      // Predicated region
      $region25: #{tpu_custom_call.1} parent=5 // pred_check
        _
      $region26: #{tpu_custom_call.1} parent=5 // pred_check_branch
        %154 = sbr.rel (%p151) target = $region28
      $region27: #{tpu_custom_call.1} parent=5 // pred_region
        %s155 = ssub.s32 %s15, 1
        %s156 = sand.u32 %s28, 1
        %s157 = scalar_lea.sflag [#allocation3], %s156
        %s158 = sand.u32 %s28, 1
        %s159 = smul.addr %s158, 32
        %s160 = scalar_lea.vmem [#allocation2], %s159
        // Predicated region
        $region29: #{tpu_custom_call.1} parent=27 // pred_check
          %p161 = pneg %p41
        $region30: #{tpu_custom_call.1} parent=27 // pred_check_branch
          %163 = sbr.rel (%p161) target = $region32
        $region31: #{tpu_custom_call.1} parent=27 // pred_region
          %164 = dma.done %s157, 512
        $region32: #{tpu_custom_call.1} parent=27 // pred_fallthru
          _
        // Predicated region
        $region33: #{tpu_custom_call.1} parent=27 // pred_check
          %p165 = pneg %p62
        $region34: #{tpu_custom_call.1} parent=27 // pred_check_branch
          %167 = sbr.rel (%p165) target = $region36
        $region35: #{tpu_custom_call.1} parent=27 // pred_region
          %168 = dma.done [#allocation6], 5120
        $region36: #{tpu_custom_call.1} parent=27 // pred_fallthru
          _
        %s169 = sand.u32 %s28, 1
        %s170 = scalar_lea.sflag [#allocation3], %s169
        %s171 = sand.u32 %s28, 1
        %s172 = smul.addr %s171, 32
        %s173 = scalar_lea.vmem [#allocation2], %s172
        %p174 = pneg %p41
        %p175 = pneg %p38
        %p176 = pneg %p62
        %p177 = pneg %p59
        %p178 = pneg %p88
        %p179 = pneg %p85
        %s180 = sand.u32 %s75, 1
        %s181 = scalar_lea.sflag [#allocation4], %s180
        %s182 = sand.u32 %s75, 1
        %s183 = smul.addr %s182, 32
        %s184 = scalar_lea.vmem [#allocation7], %s183
        %s185 = smul.u32 2, %s20
        %s186 = ssub.s32 3, %s185
        %p187 = scmp.lt.s32.totalorder %s186, 2
        %s188 = scalar_select %p187, %s186, 2
        %s189 = smul.u32 128, %s188
        %s190 = smul.u32 %s189, 2
        %s191 = smul.u32 2, %s20
        %s192 = ssub.s32 3, %s191
        %p193 = scmp.lt.s32.totalorder %s192, 2
        %s194 = scalar_select %p193, %s192, 2
        %s195 = smul.u32 128, %s194
        %s196 = smul.u32 %s195, 2
        %v197 = vld [vmem:[%s160] sm:$0xff]
        %v198 = vld [vmem:[%s160 + $0x8] sm:$0xff]
        %v199 = vld [vmem:[%s160 + $0x10] sm:$0xff]
        %v200 = vld [vmem:[%s160 + $0x18] sm:$0xff]
        %v201 = vld [vmem:[#allocation5] sm:$0xff]
        %v202 = vld [vmem:[#allocation5 + $0x8] sm:$0xff]
        %v203 = vld [vmem:[#allocation5 + $0x10] sm:$0xff]
        %v204 = vld [vmem:[#allocation5 + $0x18] sm:$0xff]
        %v205 = vld [vmem:[#allocation5 + $0x20] sm:$0xff]
        %v206 = vld [vmem:[#allocation5 + $0x28] sm:$0xff]
        %v207 = vld [vmem:[#allocation5 + $0x30] sm:$0xff]
        %v208 = vld [vmem:[#allocation5 + $0x38] sm:$0xff]
        %v209 = vld [vmem:[#allocation5 + $0x40] sm:$0xff]
        %v210 = vld [vmem:[#allocation5 + $0x48] sm:$0xff]
        %v211 = vld [vmem:[#allocation5 + $0x50] sm:$0xff]
        %v212 = vld [vmem:[#allocation5 + $0x58] sm:$0xff]
        %v213 = vld [vmem:[#allocation5 + $0x60] sm:$0xff]
        %v214 = vld [vmem:[#allocation5 + $0x68] sm:$0xff]
        %v215 = vld [vmem:[#allocation5 + $0x70] sm:$0xff]
        %v216 = vld [vmem:[#allocation5 + $0x78] sm:$0xff]
        %v217 = vld [vmem:[#allocation5 + $0x80] sm:$0xff]
        %v218 = vld [vmem:[#allocation5 + $0x88] sm:$0xff]
        %v219 = vld [vmem:[#allocation5 + $0x90] sm:$0xff]
        %v220 = vld [vmem:[#allocation5 + $0x98] sm:$0xff]
        %v221 = vld [vmem:[#allocation5 + $0xa0] sm:$0xff]
        %v222 = vld [vmem:[#allocation5 + $0xa8] sm:$0xff]
        %v223 = vld [vmem:[#allocation5 + $0xb0] sm:$0xff]
        %v224 = vld [vmem:[#allocation5 + $0xb8] sm:$0xff]
        %v225 = vld [vmem:[#allocation5 + $0xc0] sm:$0xff]
        %v226 = vld [vmem:[#allocation5 + $0xc8] sm:$0xff]
        %v227 = vld [vmem:[#allocation5 + $0xd0] sm:$0xff]
        %v228 = vld [vmem:[#allocation5 + $0xd8] sm:$0xff]
        %v229 = vld [vmem:[#allocation5 + $0xe0] sm:$0xff]
        %v230 = vld [vmem:[#allocation5 + $0xe8] sm:$0xff]
        %v231 = vld [vmem:[#allocation5 + $0xf0] sm:$0xff]
        %v232 = vld [vmem:[#allocation5 + $0xf8] sm:$0xff]
        %v233 = vld [vmem:[#allocation5 + $0x100] sm:$0xff]
        %v234 = vld [vmem:[#allocation5 + $0x108] sm:$0xff]
        %v235 = vld [vmem:[#allocation5 + $0x110] sm:$0xff]
        %v236 = vld [vmem:[#allocation5 + $0x118] sm:$0xff]
        %v237 = vld [vmem:[#allocation5 + $0x120] sm:$0xff]
        %v238 = vld [vmem:[#allocation5 + $0x128] sm:$0xff]
        %v239 = vld [vmem:[#allocation5 + $0x130] sm:$0xff]
        %v240 = vld [vmem:[#allocation5 + $0x138] sm:$0xff]
        %vm241 = vcmask 261120
        %v243 = vsel %vm241, %v198, 0
        %v246 = vsel %vm241, %v200, 0
        %248 = vmatprep.subr.mxu0 %v202
        %249 = vmatpush1.msra.mxu0 %v201
        %250 = vmatprep.subr.mxu0 %v204
        %251 = vmatpush1.msra.mxu0 %v203
        %252 = vmatprep.subr.mxu0 %v206
        %253 = vmatpush1.msra.mxu0 %v205
        %254 = vmatprep.subr.mxu0 %v208
        %255 = vmatpush1.msra.mxu0 %v207
        %256 = vmatprep.subr.mxu0 %v210
        %257 = vmatpush1.msra.mxu0 %v209
        %258 = vmatprep.subr.mxu0 %v212
        %259 = vmatpush1.msra.mxu0 %v211
        %260 = vmatprep.subr.mxu0 %v214
        %261 = vmatpush1.msra.mxu0 %v213
        %262 = vmatprep.subr.mxu0 %v216
        %263 = vmatpush1.msra.mxu0 %v215
        %264 = vmatprep.subr.mxu0 %v218
        %265 = vmatpush1.msra.mxu0 %v217
        %266 = vmatprep.subr.mxu0 %v220
        %267 = vmatpush1.msra.mxu0 %v219
        %268 = vmatprep.subr.mxu0 %v222
        %269 = vmatpush1.msra.mxu0 %v221
        %270 = vmatprep.subr.mxu0 %v224
        %271 = vmatpush1.msra.mxu0 %v223
        %272 = vmatprep.subr.mxu0 %v226
        %273 = vmatpush1.msra.mxu0 %v225
        %274 = vmatprep.subr.mxu0 %v228
        %275 = vmatpush1.msra.mxu0 %v227
        %276 = vmatprep.subr.mxu0 %v230
        %277 = vmatpush1.msra.mxu0 %v229
        %278 = vmatprep.subr.mxu0 %v232
        %279 = vmatpush1.msra.mxu0 %v231
        %280 = vmatprep.subr.mxu0 %v234
        %281 = vmatpush1.msra.mxu0 %v233
        %282 = vmatprep.subr.mxu0 %v236
        %283 = vmatpush1.msra.mxu0 %v235
        %284 = vmatprep.subr.mxu0 %v238
        %285 = vmatpush1.msra.mxu0 %v237
        %286 = vmatprep.subr.mxu0 %v240
        %287 = vmatpush1.msra.mxu0 %v239
        %288 = vmatprep.subr.mxu0 0.0
        %289 = vmatpush1.msra.mxu0 0.0
        %290 = vmatprep.subr.mxu0 0.0
        %291 = vmatpush1.msra.mxu0 0.0
        %292 = vmatprep.subr.mxu0 0.0
        %293 = vmatpush1.msra.mxu0 0.0
        %294 = vmatprep.subr.mxu0 0.0
        %295 = vmatpush1.msra.mxu0 0.0
        %296 = vmatprep.subr.mxu0 0.0
        %297 = vmatpush1.msra.mxu0 0.0
        %298 = vmatprep.subr.mxu0 0.0
        %299 = vmatpush1.msra.mxu0 0.0
        %300 = vmatprep.subr.mxu0 0.0
        %301 = vmatpush1.msra.mxu0 0.0
        %302 = vmatprep.subr.mxu0 0.0
        %303 = vmatpush1.msra.mxu0 0.0
        %304 = vmatprep.subr.mxu0 0.0
        %305 = vmatpush1.msra.mxu0 0.0
        %306 = vmatprep.subr.mxu0 0.0
        %307 = vmatpush1.msra.mxu0 0.0
        %308 = vmatprep.subr.mxu0 0.0
        %309 = vmatpush1.msra.mxu0 0.0
        %310 = vmatprep.subr.mxu0 0.0
        %311 = vmatpush1.msra.mxu0 0.0
        %312 = vmatprep.mubr.f32.mxu0 %v243
        %313 = vmatmul.mubr.f32.gmra.mrb[0].mxu0 %v197
        %v314 = vpop.f32.mrb[0].mxu0
        %v315 = vadd.f32 0.0, %v314
        %v316 = vpop.f32.mrb[0].mxu0
        %v317 = vadd.f32 0.0, %v316
        %318 = vmatprep.mubr.f32.mxu0 %v246
        %319 = vmatmul.mubr.f32.gmra.mrb[0].mxu0 %v199
        %v320 = vpop.f32.mrb[0].mxu0
        %v321 = vadd.f32 0.0, %v320
        %v322 = vpop.f32.mrb[0].mxu0
        %v323 = vadd.f32 0.0, %v322
        %324 = vdwg.mxu0
        %325 = vst [vmem:[%s184] sm:$0xff] %v315
        %326 = vst.msk [vmem:[%s184 + $0x8] sm:$0xff] %vm241, %v317
        %327 = vst [vmem:[%s184 + $0x10] sm:$0xff] %v321
        %328 = vst.msk [vmem:[%s184 + $0x18] sm:$0xff] %vm241, %v323
        %s329 = sand.u32 %s75, 1
        %s330 = scalar_lea.sflag [#allocation4], %s329
        %s331 = sand.u32 %s75, 1
        %s332 = smul.addr %s331, 32
        %s333 = scalar_lea.vmem [#allocation7], %s332
        // Predicated region
        $region37: #{tpu_custom_call.1} parent=27 // pred_check
          %p334 = pneg %p85
        $region38: #{tpu_custom_call.1} parent=27 // pred_check_branch
          %336 = sbr.rel (%p334) target = $region40
        $region39: #{tpu_custom_call.1} parent=27 // pred_region
          %s337 = smul.u32 2, %s20
          %s338 = ssub.s32 3, %s337
          %p339 = scmp.lt.s32.totalorder %s338, 2
          %s340 = scalar_select %p339, %s338, 2
          %s341 = smul.u32 128, %s340
          %s342 = smul.u32 %s341, 2
          %s344 = ssub.s32 512, %s342
          %345 = vsyncadd %s330, %s344
          %p346 = scmp.ne.s32.totalorder 0, %s342
          %s347 = smul.addr %s337, 2
          %s348 = smul.addr %s347, 128
          %s349 = scalar_lea.hbm %s2, %s348
          %s350 = smul.u32 16, %s340
          %s351 = sshll.u32 %s333, 4
          %s352 = int_to_ptr.vmem [resolvable:$true] %s351
          %s353 = sshll.u32 %s350, 4
          %357 = dma.vmem_to_hbm [thread:$0]  (%p346), %s352, %s353, %s349, %s330, 256, 256, 16
        $region40: #{tpu_custom_call.1} parent=27 // pred_fallthru
          _
      $region28: #{tpu_custom_call.1} parent=5 // pred_fallthru
        _
      %p358 = scmp.le.s32.totalorder 2, %s15
      // Predicated region
      $region41: #{tpu_custom_call.1} parent=5 // pred_check
        %p359 = pneg %p358
      $region42: #{tpu_custom_call.1} parent=5 // pred_check_branch
        %361 = sbr.rel (%p359) target = $region44
      $region43: #{tpu_custom_call.1} parent=5 // pred_region
        %s362 = ssub.s32 %s15, 2
        // Predicated region
        $region45: #{tpu_custom_call.1} parent=43 // pred_check
          %p363 = pneg %p91
        $region46: #{tpu_custom_call.1} parent=43 // pred_check_branch
          %365 = sbr.rel (%p363) target = $region48
        $region47: #{tpu_custom_call.1} parent=43 // pred_region
          %s366 = sand.u32 %s76, 1
          %s367 = scalar_lea.sflag [#allocation4], %s366
          %s368 = sand.u32 %s76, 1
          %s369 = smul.addr %s368, 32
          %s370 = scalar_lea.vmem [#allocation7], %s369
          %371 = dma.done %s367, 512
        $region48: #{tpu_custom_call.1} parent=43 // pred_fallthru
          _
      $region44: #{tpu_custom_call.1} parent=5 // pred_fallthru
        _
    $region6: #{tpu_custom_call.1} parent=1 // loop_footer
      %s19 = sadd.s32 1, %s15
    $region7: #{tpu_custom_call.1} parent=1 // loop_footer_branch
      %14 = sbr.rel target = $region3
    $region8: #{tpu_custom_call.1} parent=1 // loop_exit
      _
    %372 = vsyncpa [#allocation3], 1
    %s373 = scalar_lea.sflag [#allocation3], 1
    %374 = vsyncpa %s373, 1
    %375 = vsyncpa [#allocation6], 1
    %376 = vsyncpa [#allocation4], 1
    %s377 = scalar_lea.sflag [#allocation4], 1
    %378 = vsyncpa %s377, 1

</llo_original>
